<compile_context>
chip_gen: v7x
topology: tpu7x:2x2x1
jax: 0.10.0
libtpu: 0.0.40
codegen_flags: <defaults>
</compile_context>

<pallas_src>
import jax
import jax.numpy as jnp
from jax.experimental import pallas as pl
from jax.experimental.pallas import tpu as pltpu


def _round_up(x, m):
    return ((x + m - 1) // m) * m


def _tpu_vmem_capacity_bytes():
    try:
        return int(pltpu.get_tpu_info().vmem_capacity_bytes)
    except Exception:
        return 64 << 20  # conservative (v7x per-TC physical VMEM)


def _device_kind():
    try:
        return jax.devices()[0].device_kind.lower()
    except Exception:
        return ""


def _default_batch_tile():
    # v6e/v7x MXU is 256 wide on the M dim -> TB=256 fills it.
    # v5e MXU is 128 wide -> keep TB=128 there.
    kind = _device_kind()
    if "v5 lite" in kind or "v5lite" in kind or "v5e" in kind:
        return 128
    return 256


def _num_tensorcores_per_chip():
    # Only v7x has 2 TensorCores per chip sharing the grid via megacore.
    return 2 if "v7" in _device_kind() else 1


def _onehot_gather_kernel(labels_ref, table_ref, out_ref):
    # labels_ref: (TB, 1) int32    table_ref: (TV, Hp)    out_ref: (TB, Hp)
    v = pl.program_id(1)
    tb = out_ref.shape[0]
    tv = table_ref.shape[0]

    # Output block index is constant along the V axis -> resident accumulator.
    @pl.when(v == 0)
    def _():
        out_ref[...] = jnp.zeros_like(out_ref)

    # Global column ids covered by this V tile.
    col = jax.lax.broadcasted_iota(jnp.int32, (tb, tv), dimension=1) + v * tv
    onehot = (labels_ref[...] == col).astype(table_ref.dtype)
    # out[b, :] += sum_v onehot[b, v] * table[v, :]  (exact row selection)
    update = jnp.dot(onehot, table_ref[...], preferred_element_type=jnp.float32)
    out_ref[...] += update.astype(out_ref.dtype)


def pad_table(table):
    """Pad an embedding table to (8,128)-friendly extents. Do this ONCE at init."""
    V, H = table.shape
    Vp, Hp = _round_up(V, 128), _round_up(H, 128)
    if (Vp, Hp) != (V, H):
        table = jnp.zeros((Vp, Hp), table.dtype).at[:V, :H].set(table)
    return table, (V, H)


def embedding_lookup(labels, table, *, true_vh=None, batch_tile=None):
    """Pallas embedding gather: out[b, :] = table[labels[b], :].

    `table` may be pre-padded (pass the logical (V, H) via `true_vh`); if not,
    it is padded here (extra per-call HBM traffic - prefer pre-padding).
    """
    B = labels.shape[0]
    if true_vh is None:
        V, H = table.shape
    else:
        V, H = true_vh
    dtype = table.dtype
    itemsize = jnp.dtype(dtype).itemsize

    if batch_tile is None:
        batch_tile = _default_batch_tile()

    # ---- batch tiling (sublane-aligned) ----
    Bp = _round_up(max(B, 8), 8)
    TB = min(batch_tile, Bp)
    # v7x megacore: make sure the grid has >= 2 batch steps so both TCs work.
    if _num_tensorcores_per_chip() > 1 and Bp // TB < 2 and Bp // 2 >= 8:
        TB = _round_up(Bp // 2, 8)
    Bp = _round_up(Bp, TB)

    # ---- lane-aligned table extents ----
    Hp = _round_up(H, 128)
    Vp = _round_up(V, 128)

    capacity = _tpu_vmem_capacity_bytes()
    soft_cap = int(0.75 * capacity)          # decision / requested budget
    hard_cap = int(0.95 * capacity)          # never request more than this

    def body_bytes(tv, table_copies):
        return (table_copies * tv * Hp * itemsize     # table buffer(s)
                + 2 * TB * Hp * max(itemsize, 4)       # output tiles / f32 result
                + 2 * TB * tv * 4                      # one-hot / iota temporaries
                + 2 * TB * 4                           # label tiles
                + (1 << 20))                           # margin

    # Whole-table-resident if it fits; otherwise tile V (reduction axis).
    if body_bytes(Vp, 1) <= soft_cap:
        TV = Vp
    else:
        TV = 128
        for cand in (8192, 4096, 2048, 1024, 512, 256, 128):
            if body_bytes(cand, 2) <= soft_cap:
                TV = cand
                break
        Vp = _round_up(Vp, TV)

    # ---- pad operands (labels are tiny; table pad only if not pre-padded) ----
    labels_2d = jnp.zeros((Bp, 1), jnp.int32).at[:B, 0].set(labels.astype(jnp.int32))
    if table.shape == (Vp, Hp):
        table_p = table
    else:
        table_p = jnp.zeros((Vp, Hp), dtype).at[:V, :H].set(table[:V, :H])

    nb, nv = Bp // TB, Vp // TV
    grid = (nb, nv)

    def build(single_buffer_table):
        table_copies = 1 if single_buffer_table else 2
        vmem_bytes = min(int(body_bytes(TV, table_copies)), hard_cap)
        if single_buffer_table:
            # Constant block index -> second pipeline buffer is pure waste.
            table_spec = pl.BlockSpec((TV, Hp), lambda i, v: (v, 0),
                                      pipeline_mode=pl.Buffered(1))
        else:
            table_spec = pl.BlockSpec((TV, Hp), lambda i, v: (v, 0))
        return pl.pallas_call(
            _onehot_gather_kernel,
            out_shape=jax.ShapeDtypeStruct((Bp, Hp), dtype),
            grid_spec=pl.GridSpec(
                grid=grid,
                in_specs=[
                    pl.BlockSpec((TB, 1), lambda i, v: (i, 0)),  # labels tile
                    table_spec,                                   # table tile
                ],
                out_specs=pl.BlockSpec((TB, Hp), lambda i, v: (i, 0)),
            ),
            compiler_params=pltpu.CompilerParams(
                dimension_semantics=("parallel", "arbitrary"),
                vmem_limit_bytes=vmem_bytes,
            ),
        )

    if nv == 1:
        # Single V step: table block index never changes -> single-buffer it.
        try:
            out = build(True)(labels_2d, table_p)
        except Exception:
            # pipeline_mode / Buffered(1) unavailable -> default pipelining.
            out = build(False)(labels_2d, table_p)
    else:
        out = build(False)(labels_2d, table_p)

    return out[:B, :H]


class LabelEmbedder:
    """JAX/Pallas port of the PyTorch LabelEmbedder."""

    def __init__(self, num_classes, hidden_size, dropout_prob, key,
                 dtype=jnp.float32):
        use_cfg_embedding = int(dropout_prob > 0)
        # Matches nn.Embedding's default N(0, 1) init.  Pass dtype=jnp.bfloat16
        # to halve table DMA / VMEM if the downstream model runs in bf16.
        table = jax.random.normal(
            key, (num_classes + use_cfg_embedding, hidden_size),
            dtype=jnp.float32).astype(dtype)
        self.embedding_table = table
        self.num_classes = num_classes
        self.hidden_size = hidden_size
        self.dropout_prob = dropout_prob
        # Pad once at init so the per-call path issues no HBM pad op.
        self._table_padded, self._true_vh = pad_table(table)

    def token_drop(self, labels, rng, force_drop_ids=None):
        if force_drop_ids is None:
            drop_ids = jax.random.uniform(rng, (labels.shape[0],)) < self.dropout_prob
        else:
            drop_ids = force_drop_ids == 1
        return jnp.where(drop_ids, jnp.int32(self.num_classes),
                         labels.astype(jnp.int32))

    def __call__(self, labels, train, rng=None, force_drop_ids=None):
        use_dropout = self.dropout_prob > 0
        if force_drop_ids is not None and not use_dropout:
            raise ValueError(
                "force_drop_ids requires dropout_prob > 0 (the table has no "
                "CFG row to drop to)")
        if (train and use_dropout) or (force_drop_ids is not None):
            if force_drop_ids is None and rng is None:
                raise ValueError(
                    "rng is required when train=True, dropout_prob > 0 and "
                    "force_drop_ids is None")
            labels = self.token_drop(labels, rng, force_drop_ids)
        return embedding_lookup(labels, self._table_padded, true_vh=self._true_vh)


if __name__ == "__main__":
    num_classes = 10
    hidden_size = 32
    dropout_prob = 0.1
    batch = 8

    root = jax.random.PRNGKey(0)
    k_table, k_labels, k_drop = jax.random.split(root, 3)

    embedder = LabelEmbedder(num_classes, hidden_size, dropout_prob, k_table)

    labels = jax.random.randint(k_labels, (batch,), 0, num_classes, dtype=jnp.int32)
    # Deterministic force_drop_ids so the CFG-drop path is exercised reproducibly.
    force_drop_ids = jnp.array([1, 1, 0, 0, 0, 0, 0, 0], dtype=jnp.int32)

    out = jax.block_until_ready(
        embedder(labels, train=True, rng=k_drop, force_drop_ids=force_drop_ids))

    # Pure-JAX reference.
    eff_labels = jnp.where(force_drop_ids == 1, jnp.int32(num_classes), labels)
    ref = jnp.take(embedder.embedding_table, eff_labels, axis=0)
    assert out.shape == (batch, hidden_size)
    assert jnp.allclose(out, ref, rtol=1e-6, atol=1e-6)

    # Eval path (no dropout).
    out_eval = jax.block_until_ready(embedder(labels, train=False))
    ref_eval = jnp.take(embedder.embedding_table, labels, axis=0)
    assert jnp.allclose(out_eval, ref_eval, rtol=1e-6, atol=1e-6)

    # Un-prepadded / odd-batch path (exercises the in-function padding fallback).
    out_small = jax.block_until_ready(
        embedding_lookup(labels[:5], embedder.embedding_table))
    ref_small = jnp.take(embedder.embedding_table, labels[:5], axis=0)
    assert out_small.shape == (5, hidden_size)
    assert jnp.allclose(out_small, ref_small, rtol=1e-6, atol=1e-6)

    print("KERNEL_OK")
</pallas_src>

<mosaic_0001>
module attributes {stable_mosaic.version = 11 : i64} {
  func.func @_onehot_gather_kernel(%arg0: i32, %arg1: i32, %arg2: memref<8x1xi32, #tpu.memory_space<vmem>>, %arg3: memref<128x128xf32, #tpu.memory_space<vmem>>, %arg4: memref<8x128xf32, #tpu.memory_space<vmem>>) attributes {dimension_semantics = [#tpu.dimension_semantics<parallel>, #tpu.dimension_semantics<arbitrary>], iteration_bounds = array<i64: 1, 1>, scalar_prefetch = 0 : i64, scratch_operands = 0 : i64, tpu.core_type = #tpu.core_type<tc>, window_params = [{transform_indices = @transform_0, window_bounds = array<i64: 8, 1>}, {pipeline_mode = #tpu.pipeline_mode<synchronous>, transform_indices = @transform_1, window_bounds = array<i64: 128, 128>}, {transform_indices = @transform_2, window_bounds = array<i64: 8, 128>}]} {
    %c0_i32 = arith.constant 0 : i32
    %0 = arith.cmpi eq, %arg1, %c0_i32 : i32
    %1 = arith.extui %0 : i1 to i32
    %c0_i32_0 = arith.constant 0 : i32
    %2 = arith.cmpi ne, %1, %c0_i32_0 : i32
    scf.if %2 {
      %cst_8 = arith.constant 0.000000e+00 : f32
      %17 = vector.broadcast %cst_8 : f32 to vector<8x128xf32>
      %c0_9 = arith.constant 0 : index
      %c0_10 = arith.constant 0 : index
      %18 = vector.load %arg4[%c0_9, %c0_10] : memref<8x128xf32, #tpu.memory_space<vmem>>, vector<8x128xf32>
      tpu.vector_store %arg4[%c0_9, %c0_10], %17 {strides = array<i32>} : memref<8x128xf32, #tpu.memory_space<vmem>>, vector<8x128xf32>,
    } else {
    }
    %3 = tpu.iota {dimensions = array<i32: 1>} : vector<8x128xi32>
    %c128_i32 = arith.constant 128 : i32
    %4 = arith.muli %arg1, %c128_i32 : i32
    %5 = vector.broadcast %4 : i32 to vector<8x128xi32>
    %6 = arith.addi %3, %5 : vector<8x128xi32>
    %c0 = arith.constant 0 : index
    %c0_1 = arith.constant 0 : index
    %7 = vector.load %arg2[%c0, %c0_1] : memref<8x1xi32, #tpu.memory_space<vmem>>, vector<8x1xi32>
    %8 = vector.broadcast %7 : vector<8x1xi32> to vector<8x128xi32>
    %9 = arith.cmpi eq, %8, %6 : vector<8x128xi32>
    %10 = arith.extui %9 : vector<8x128xi1> to vector<8x128xi32>
    %11 = arith.sitofp %10 : vector<8x128xi32> to vector<8x128xf32>
    %c0_2 = arith.constant 0 : index
    %c0_3 = arith.constant 0 : index
    %12 = vector.load %arg3[%c0_2, %c0_3] : memref<128x128xf32, #tpu.memory_space<vmem>>, vector<128x128xf32>
    %cst = arith.constant dense<0.000000e+00> : vector<8x128xf32>
    %13 = tpu.matmul %11, %12, %cst {dimension_numbers = #tpu.dot_dimension_numbers<[1], [0], [0], [1], [0, 0, 1, 1], [], []>} : vector<8x128xf32>, vector<128x128xf32>, vector<8x128xf32> -> vector<8x128xf32>
    %c0_4 = arith.constant 0 : index
    %c0_5 = arith.constant 0 : index
    %14 = vector.load %arg4[%c0_4, %c0_5] : memref<8x128xf32, #tpu.memory_space<vmem>>, vector<8x128xf32>
    %15 = arith.addf %14, %13 : vector<8x128xf32>
    %c0_6 = arith.constant 0 : index
    %c0_7 = arith.constant 0 : index
    %16 = vector.load %arg4[%c0_6, %c0_7] : memref<8x128xf32, #tpu.memory_space<vmem>>, vector<8x128xf32>
    tpu.vector_store %arg4[%c0_6, %c0_7], %15 {strides = array<i32>} : memref<8x128xf32, #tpu.memory_space<vmem>>, vector<8x128xf32>,
    return
  }
  func.func @transform_0(%arg0: i32, %arg1: i32) -> (i32, i32) {
    %c0_i32 = arith.constant 0 : i32
    %c0_i32_0 = arith.constant 0 : i32
    return %arg0, %c0_i32 : i32, i32
  }
  func.func @transform_1(%arg0: i32, %arg1: i32) -> (i32, i32) {
    %c0_i32 = arith.constant 0 : i32
    %c0_i32_0 = arith.constant 0 : i32
    return %arg1, %c0_i32 : i32, i32
  }
  func.func @transform_2(%arg0: i32, %arg1: i32) -> (i32, i32) {
    %c0_i32 = arith.constant 0 : i32
    %c0_i32_0 = arith.constant 0 : i32
    return %arg0, %c0_i32 : i32, i32
  }
}

module attributes {stable_mosaic.version = 11 : i64} {
  func.func @_onehot_gather_kernel(%arg0: i32, %arg1: i32, %arg2: memref<8x1xi32, #tpu.memory_space<vmem>>, %arg3: memref<128x128xf32, #tpu.memory_space<vmem>>, %arg4: memref<8x128xf32, #tpu.memory_space<vmem>>) attributes {dimension_semantics = [#tpu.dimension_semantics<parallel>, #tpu.dimension_semantics<arbitrary>], iteration_bounds = array<i64: 1, 1>, scalar_prefetch = 0 : i64, scratch_operands = 0 : i64, tpu.core_type = #tpu.core_type<tc>, window_params = [{transform_indices = @transform_0, window_bounds = array<i64: 8, 1>}, {transform_indices = @transform_1, window_bounds = array<i64: 128, 128>}, {transform_indices = @transform_2, window_bounds = array<i64: 8, 128>}]} {
    %c0_i32 = arith.constant 0 : i32
    %0 = arith.cmpi eq, %arg1, %c0_i32 : i32
    %1 = arith.extui %0 : i1 to i32
    %c0_i32_0 = arith.constant 0 : i32
    %2 = arith.cmpi ne, %1, %c0_i32_0 : i32
    scf.if %2 {
      %cst_8 = arith.constant 0.000000e+00 : f32
      %17 = vector.broadcast %cst_8 : f32 to vector<8x128xf32>
      %c0_9 = arith.constant 0 : index
      %c0_10 = arith.constant 0 : index
      %18 = vector.load %arg4[%c0_9, %c0_10] : memref<8x128xf32, #tpu.memory_space<vmem>>, vector<8x128xf32>
      tpu.vector_store %arg4[%c0_9, %c0_10], %17 {strides = array<i32>} : memref<8x128xf32, #tpu.memory_space<vmem>>, vector<8x128xf32>,
    } else {
    }
    %3 = tpu.iota {dimensions = array<i32: 1>} : vector<8x128xi32>
    %c128_i32 = arith.constant 128 : i32
    %4 = arith.muli %arg1, %c128_i32 : i32
    %5 = vector.broadcast %4 : i32 to vector<8x128xi32>
    %6 = arith.addi %3, %5 : vector<8x128xi32>
    %c0 = arith.constant 0 : index
    %c0_1 = arith.constant 0 : index
    %7 = vector.load %arg2[%c0, %c0_1] : memref<8x1xi32, #tpu.memory_space<vmem>>, vector<8x1xi32>
    %8 = vector.broadcast %7 : vector<8x1xi32> to vector<8x128xi32>
    %9 = arith.cmpi eq, %8, %6 : vector<8x128xi32>
    %10 = arith.extui %9 : vector<8x128xi1> to vector<8x128xi32>
    %11 = arith.sitofp %10 : vector<8x128xi32> to vector<8x128xf32>
    %c0_2 = arith.constant 0 : index
    %c0_3 = arith.constant 0 : index
    %12 = vector.load %arg3[%c0_2, %c0_3] : memref<128x128xf32, #tpu.memory_space<vmem>>, vector<128x128xf32>
    %cst = arith.constant dense<0.000000e+00> : vector<8x128xf32>
    %13 = tpu.matmul %11, %12, %cst {dimension_numbers = #tpu.dot_dimension_numbers<[1], [0], [0], [1], [0, 0, 1, 1], [], []>} : vector<8x128xf32>, vector<128x128xf32>, vector<8x128xf32> -> vector<8x128xf32>
    %c0_4 = arith.constant 0 : index
    %c0_5 = arith.constant 0 : index
    %14 = vector.load %arg4[%c0_4, %c0_5] : memref<8x128xf32, #tpu.memory_space<vmem>>, vector<8x128xf32>
    %15 = arith.addf %14, %13 : vector<8x128xf32>
    %c0_6 = arith.constant 0 : index
    %c0_7 = arith.constant 0 : index
    %16 = vector.load %arg4[%c0_6, %c0_7] : memref<8x128xf32, #tpu.memory_space<vmem>>, vector<8x128xf32>
    tpu.vector_store %arg4[%c0_6, %c0_7], %15 {strides = array<i32>} : memref<8x128xf32, #tpu.memory_space<vmem>>, vector<8x128xf32>,
    return
  }
  func.func @transform_0(%arg0: i32, %arg1: i32) -> (i32, i32) {
    %c0_i32 = arith.constant 0 : i32
    %c0_i32_0 = arith.constant 0 : i32
    return %arg0, %c0_i32 : i32, i32
  }
  func.func @transform_1(%arg0: i32, %arg1: i32) -> (i32, i32) {
    %c0_i32 = arith.constant 0 : i32
    %c0_i32_0 = arith.constant 0 : i32
    return %arg1, %c0_i32 : i32, i32
  }
  func.func @transform_2(%arg0: i32, %arg1: i32) -> (i32, i32) {
    %c0_i32 = arith.constant 0 : i32
    %c0_i32_0 = arith.constant 0 : i32
    return %arg0, %c0_i32 : i32, i32
  }
}

</mosaic_0001>

<llo_original>
// kernel: tpu_custom_call.1
$region0: #{tpu_custom_call.1}
  #allocation0 [shape = 'u32[]', space=smem, size = 0x4, offset = 0x4, fixed_abs, tag = 'smem constant byte address 0x4 - core index']
  #allocation1 [shape = 'u32[144,128]{1,0:T(1,128)}', space=vmem, size = 0x12000, scoped, tag = 'internal scratch']
  %s0 = inlined_call_operand.vmem [shape: s32[8,1], index: 0, kind: input, shape index: {}]
  %s1 = inlined_call_operand.hbm [shape: f32[128,128], index: 1, kind: input, shape index: {}]
  %s2 = inlined_call_operand.hbm [shape: f32[8,128], index: 2, kind: output, shape index: {}]
  %s3 = sld [smem:[#allocation0]]
  $region26: #{tpu_custom_call.1} parent=0
    _
  %s5 = ssub.s32 1, %s3
  %s6 = scalar_select 0, %s5, %s3
  $region1: #{tpu_custom_call.1} parent=0
    #allocation2 [shape = 'u8[65536]{0}', space=vmem, size = 0x10000, scoped, tag = 'input window, operand 1, single buffered']
    #allocation3 [shape = 's32[1]{0}', space=sflag, size = 0x4, scoped, tag = 'scoped memory for tpu_custom_call.1']
    #allocation4 [shape = 's32[1]{0}', space=sflag, size = 0x4, scoped, tag = 'scoped memory for tpu_custom_call.1']
    #allocation5 [shape = 'u8[4096]{0}', space=vmem, size = 0x1000, scoped, tag = 'output window, operand 0, single buffered']
    %7 = vsyncpa [#allocation3], 0
    %8 = vsyncpa [#allocation4], 0
    // Predicated region
    $region2: #{tpu_custom_call.1} parent=1 // pred_check
      _
    $region3: #{tpu_custom_call.1} parent=1 // pred_check_branch
      %10 = sbr.rel (0) target = $region5
    $region4: #{tpu_custom_call.1} parent=1 // pred_region
      _
    $region5: #{tpu_custom_call.1} parent=1 // pred_fallthru
      _
    // Predicated region
    $region6: #{tpu_custom_call.1} parent=1 // pred_check
      _
    $region7: #{tpu_custom_call.1} parent=1 // pred_check_branch
      %12 = sbr.rel (0) target = $region9
    $region8: #{tpu_custom_call.1} parent=1 // pred_region
      %s14 = ssub.s32 2048, 2048
      %15 = vsyncadd [#allocation3], %s14
      %s16 = sshll.u32 [#allocation2], 4
      %s17 = int_to_ptr.vmem [resolvable:$true] %s16
      %22 = dma.hbm_to_vmem [thread:$0]  %s1, 2048, %s17, [#allocation3], 128, 128, 8
    $region9: #{tpu_custom_call.1} parent=1 // pred_fallthru
      _
    // Predicated region
    $region10: #{tpu_custom_call.1} parent=1 // pred_check
      _
    $region11: #{tpu_custom_call.1} parent=1 // pred_check_branch
      %24 = sbr.rel (0) target = $region13
    $region12: #{tpu_custom_call.1} parent=1 // pred_region
      %25 = dma.done [#allocation3], 2048
    $region13: #{tpu_custom_call.1} parent=1 // pred_fallthru
      _
    %p26 = scmp.eq.s32.totalorder 0, 0
    // Predicated region
    $region14: #{tpu_custom_call.1} parent=1 // pred_check
      %p27 = pneg %p26
    $region15: #{tpu_custom_call.1} parent=1 // pred_check_branch
      %29 = sbr.rel (%p27) target = $region17
    $region16: #{tpu_custom_call.1} parent=1 // pred_region
      %30 = vst [vmem:[#allocation5] sm:$0xff] 0.0
    $region17: #{tpu_custom_call.1} parent=1 // pred_fallthru
      _
    %v31 = vlaneseq
    %v32 = vand.u32 %v31, 127
    %s33 = smul.u32 0, 128
    %v34 = vstv %s33
    %v35 = vadd.s32 %v32, %v34
    %v36 = vld [vmem:[%s0] sm:$0xff]
    %37 = vset.pattern.permute.xlu0 0
    %38 = vperm.xlu0 %37, %v36
    %v39 = vpop.permute.xlu0 %38
    %vm40 = vcmp.eq.s32.totalorder %v39, %v35
    %v41 = vsel %vm40, 1, 0
    %v42 = vcvt.s32.f32 %v41
    %v43 = vld [vmem:[#allocation2] sm:$0xff]
    %v44 = vld [vmem:[#allocation2 + $0x8] sm:$0xff]
    %v45 = vld [vmem:[#allocation2 + $0x10] sm:$0xff]
    %v46 = vld [vmem:[#allocation2 + $0x18] sm:$0xff]
    %v47 = vld [vmem:[#allocation2 + $0x20] sm:$0xff]
    %v48 = vld [vmem:[#allocation2 + $0x28] sm:$0xff]
    %v49 = vld [vmem:[#allocation2 + $0x30] sm:$0xff]
    %v50 = vld [vmem:[#allocation2 + $0x38] sm:$0xff]
    %v51 = vld [vmem:[#allocation2 + $0x40] sm:$0xff]
    %v52 = vld [vmem:[#allocation2 + $0x48] sm:$0xff]
    %v53 = vld [vmem:[#allocation2 + $0x50] sm:$0xff]
    %v54 = vld [vmem:[#allocation2 + $0x58] sm:$0xff]
    %v55 = vld [vmem:[#allocation2 + $0x60] sm:$0xff]
    %v56 = vld [vmem:[#allocation2 + $0x68] sm:$0xff]
    %v57 = vld [vmem:[#allocation2 + $0x70] sm:$0xff]
    %v58 = vld [vmem:[#allocation2 + $0x78] sm:$0xff]
    %59 = vmatprep.subr.mxu0 0.0
    %60 = vmatpush1.msra.mxu0 %v43
    %61 = vmatprep.subr.mxu0 0.0
    %62 = vmatpush1.msra.mxu0 %v44
    %63 = vmatprep.subr.mxu0 0.0
    %64 = vmatpush1.msra.mxu0 %v45
    %65 = vmatprep.subr.mxu0 0.0
    %66 = vmatpush1.msra.mxu0 %v46
    %67 = vmatprep.subr.mxu0 0.0
    %68 = vmatpush1.msra.mxu0 %v47
    %69 = vmatprep.subr.mxu0 0.0
    %70 = vmatpush1.msra.mxu0 %v48
    %71 = vmatprep.subr.mxu0 0.0
    %72 = vmatpush1.msra.mxu0 %v49
    %73 = vmatprep.subr.mxu0 0.0
    %74 = vmatpush1.msra.mxu0 %v50
    %75 = vmatprep.subr.mxu0 0.0
    %76 = vmatpush1.msra.mxu0 %v51
    %77 = vmatprep.subr.mxu0 0.0
    %78 = vmatpush1.msra.mxu0 %v52
    %79 = vmatprep.subr.mxu0 0.0
    %80 = vmatpush1.msra.mxu0 %v53
    %81 = vmatprep.subr.mxu0 0.0
    %82 = vmatpush1.msra.mxu0 %v54
    %83 = vmatprep.subr.mxu0 0.0
    %84 = vmatpush1.msra.mxu0 %v55
    %85 = vmatprep.subr.mxu0 0.0
    %86 = vmatpush1.msra.mxu0 %v56
    %87 = vmatprep.subr.mxu0 0.0
    %88 = vmatpush1.msra.mxu0 %v57
    %89 = vmatprep.subr.mxu0 0.0
    %90 = vmatpush1.msra.mxu0 %v58
    %91 = vmatprep.subr.mxu0 0.0
    %92 = vmatpush1.msra.mxu0 0.0
    %93 = vmatprep.subr.mxu0 0.0
    %94 = vmatpush1.msra.mxu0 0.0
    %95 = vmatprep.subr.mxu0 0.0
    %96 = vmatpush1.msra.mxu0 0.0
    %97 = vmatprep.subr.mxu0 0.0
    %98 = vmatpush1.msra.mxu0 0.0
    %99 = vmatprep.subr.mxu0 0.0
    %100 = vmatpush1.msra.mxu0 0.0
    %101 = vmatprep.subr.mxu0 0.0
    %102 = vmatpush1.msra.mxu0 0.0
    %103 = vmatprep.subr.mxu0 0.0
    %104 = vmatpush1.msra.mxu0 0.0
    %105 = vmatprep.subr.mxu0 0.0
    %106 = vmatpush1.msra.mxu0 0.0
    %107 = vmatprep.subr.mxu0 0.0
    %108 = vmatpush1.msra.mxu0 0.0
    %109 = vmatprep.subr.mxu0 0.0
    %110 = vmatpush1.msra.mxu0 0.0
    %111 = vmatprep.subr.mxu0 0.0
    %112 = vmatpush1.msra.mxu0 0.0
    %113 = vmatprep.subr.mxu0 0.0
    %114 = vmatpush1.msra.mxu0 0.0
    %115 = vmatprep.subr.mxu0 0.0
    %116 = vmatpush1.msra.mxu0 0.0
    %117 = vmatprep.subr.mxu0 0.0
    %118 = vmatpush1.msra.mxu0 0.0
    %119 = vmatprep.subr.mxu0 0.0
    %120 = vmatpush1.msra.mxu0 0.0
    %121 = vmatprep.subr.mxu0 0.0
    %122 = vmatpush1.msra.mxu0 0.0
    %123 = vmatprep.mubr.f32.mxu0 0.0
    %124 = vmatmul.mubr.f32.gmra.mrb[0].mxu0 %v42
    %v125 = vpop.f32.mrb[0].mxu0
    %v126 = vadd.f32 0.0, %v125
    %v127 = vpop.f32.mrb[0].mxu0
    %128 = vdwg.mxu0
    %v129 = vld [vmem:[#allocation5] sm:$0xff]
    %v130 = vadd.f32 %v129, %v126
    %131 = vst [vmem:[#allocation5] sm:$0xff] %v130
    // Predicated region
    $region18: #{tpu_custom_call.1} parent=1 // pred_check
      _
    $region19: #{tpu_custom_call.1} parent=1 // pred_check_branch
      %133 = sbr.rel (0) target = $region21
    $region20: #{tpu_custom_call.1} parent=1 // pred_region
      %s135 = ssub.s32 128, 128
      %136 = vsyncadd [#allocation4], %s135
      %s138 = sshll.u32 [#allocation5], 4
      %s139 = int_to_ptr.vmem [resolvable:$true] %s138
      %141 = dma.vmem_to_hbm [thread:$0]  %s139, 128, %s2, [#allocation4]
    $region21: #{tpu_custom_call.1} parent=1 // pred_fallthru
      _
    // Predicated region
    $region22: #{tpu_custom_call.1} parent=1 // pred_check
      _
    $region23: #{tpu_custom_call.1} parent=1 // pred_check_branch
      %143 = sbr.rel (0) target = $region25
    $region24: #{tpu_custom_call.1} parent=1 // pred_region
      %144 = dma.done [#allocation4], 128
    $region25: #{tpu_custom_call.1} parent=1 // pred_fallthru
      _
    %145 = vsyncpa [#allocation3], 1
    %146 = vsyncpa [#allocation4], 1

// kernel: tpu_custom_call.1
$region0: #{tpu_custom_call.1}
  #allocation0 [shape = 'u32[]', space=smem, size = 0x4, offset = 0x4, fixed_abs, tag = 'smem constant byte address 0x4 - core index']
  #allocation1 [shape = 'u32[144,128]{1,0:T(1,128)}', space=vmem, size = 0x12000, scoped, tag = 'internal scratch']
  %s0 = inlined_call_operand.vmem [shape: s32[8,1], index: 0, kind: input, shape index: {}]
  %s1 = inlined_call_operand.hbm [shape: f32[128,128], index: 1, kind: input, shape index: {}]
  %s2 = inlined_call_operand.hbm [shape: f32[8,128], index: 2, kind: output, shape index: {}]
  %s3 = sld [smem:[#allocation0]]
  $region26: #{tpu_custom_call.1} parent=0
    _
  %s5 = ssub.s32 1, %s3
  %s6 = scalar_select 0, %s5, %s3
  $region1: #{tpu_custom_call.1} parent=0
    #allocation2 [shape = 'u8[65536]{0}', space=vmem, size = 0x10000, scoped, tag = 'input window, operand 1, single buffered']
    #allocation3 [shape = 's32[1]{0}', space=sflag, size = 0x4, scoped, tag = 'scoped memory for tpu_custom_call.1']
    #allocation4 [shape = 's32[1]{0}', space=sflag, size = 0x4, scoped, tag = 'scoped memory for tpu_custom_call.1']
    #allocation5 [shape = 'u8[4096]{0}', space=vmem, size = 0x1000, scoped, tag = 'output window, operand 0, single buffered']
    %7 = vsyncpa [#allocation3], 0
    %8 = vsyncpa [#allocation4], 0
    // Predicated region
    $region2: #{tpu_custom_call.1} parent=1 // pred_check
      _
    $region3: #{tpu_custom_call.1} parent=1 // pred_check_branch
      %10 = sbr.rel (0) target = $region5
    $region4: #{tpu_custom_call.1} parent=1 // pred_region
      _
    $region5: #{tpu_custom_call.1} parent=1 // pred_fallthru
      _
    // Predicated region
    $region6: #{tpu_custom_call.1} parent=1 // pred_check
      _
    $region7: #{tpu_custom_call.1} parent=1 // pred_check_branch
      %12 = sbr.rel (0) target = $region9
    $region8: #{tpu_custom_call.1} parent=1 // pred_region
      %s14 = ssub.s32 2048, 2048
      %15 = vsyncadd [#allocation3], %s14
      %s16 = sshll.u32 [#allocation2], 4
      %s17 = int_to_ptr.vmem [resolvable:$true] %s16
      %22 = dma.hbm_to_vmem [thread:$0]  %s1, 2048, %s17, [#allocation3], 128, 128, 8
    $region9: #{tpu_custom_call.1} parent=1 // pred_fallthru
      _
    // Predicated region
    $region10: #{tpu_custom_call.1} parent=1 // pred_check
      _
    $region11: #{tpu_custom_call.1} parent=1 // pred_check_branch
      %24 = sbr.rel (0) target = $region13
    $region12: #{tpu_custom_call.1} parent=1 // pred_region
      %25 = dma.done [#allocation3], 2048
    $region13: #{tpu_custom_call.1} parent=1 // pred_fallthru
      _
    %p26 = scmp.eq.s32.totalorder 0, 0
    // Predicated region
    $region14: #{tpu_custom_call.1} parent=1 // pred_check
      %p27 = pneg %p26
    $region15: #{tpu_custom_call.1} parent=1 // pred_check_branch
      %29 = sbr.rel (%p27) target = $region17
    $region16: #{tpu_custom_call.1} parent=1 // pred_region
      %30 = vst [vmem:[#allocation5] sm:$0xff] 0.0
    $region17: #{tpu_custom_call.1} parent=1 // pred_fallthru
      _
    %v31 = vlaneseq
    %v32 = vand.u32 %v31, 127
    %s33 = smul.u32 0, 128
    %v34 = vstv %s33
    %v35 = vadd.s32 %v32, %v34
    %v36 = vld [vmem:[%s0] sm:$0xff]
    %37 = vset.pattern.permute.xlu0 0
    %38 = vperm.xlu0 %37, %v36
    %v39 = vpop.permute.xlu0 %38
    %vm40 = vcmp.eq.s32.totalorder %v39, %v35
    %v41 = vsel %vm40, 1, 0
    %v42 = vcvt.s32.f32 %v41
    %v43 = vld [vmem:[#allocation2] sm:$0xff]
    %v44 = vld [vmem:[#allocation2 + $0x8] sm:$0xff]
    %v45 = vld [vmem:[#allocation2 + $0x10] sm:$0xff]
    %v46 = vld [vmem:[#allocation2 + $0x18] sm:$0xff]
    %v47 = vld [vmem:[#allocation2 + $0x20] sm:$0xff]
    %v48 = vld [vmem:[#allocation2 + $0x28] sm:$0xff]
    %v49 = vld [vmem:[#allocation2 + $0x30] sm:$0xff]
    %v50 = vld [vmem:[#allocation2 + $0x38] sm:$0xff]
    %v51 = vld [vmem:[#allocation2 + $0x40] sm:$0xff]
    %v52 = vld [vmem:[#allocation2 + $0x48] sm:$0xff]
    %v53 = vld [vmem:[#allocation2 + $0x50] sm:$0xff]
    %v54 = vld [vmem:[#allocation2 + $0x58] sm:$0xff]
    %v55 = vld [vmem:[#allocation2 + $0x60] sm:$0xff]
    %v56 = vld [vmem:[#allocation2 + $0x68] sm:$0xff]
    %v57 = vld [vmem:[#allocation2 + $0x70] sm:$0xff]
    %v58 = vld [vmem:[#allocation2 + $0x78] sm:$0xff]
    %59 = vmatprep.subr.mxu0 0.0
    %60 = vmatpush1.msra.mxu0 %v43
    %61 = vmatprep.subr.mxu0 0.0
    %62 = vmatpush1.msra.mxu0 %v44
    %63 = vmatprep.subr.mxu0 0.0
    %64 = vmatpush1.msra.mxu0 %v45
    %65 = vmatprep.subr.mxu0 0.0
    %66 = vmatpush1.msra.mxu0 %v46
    %67 = vmatprep.subr.mxu0 0.0
    %68 = vmatpush1.msra.mxu0 %v47
    %69 = vmatprep.subr.mxu0 0.0
    %70 = vmatpush1.msra.mxu0 %v48
    %71 = vmatprep.subr.mxu0 0.0
    %72 = vmatpush1.msra.mxu0 %v49
    %73 = vmatprep.subr.mxu0 0.0
    %74 = vmatpush1.msra.mxu0 %v50
    %75 = vmatprep.subr.mxu0 0.0
    %76 = vmatpush1.msra.mxu0 %v51
    %77 = vmatprep.subr.mxu0 0.0
    %78 = vmatpush1.msra.mxu0 %v52
    %79 = vmatprep.subr.mxu0 0.0
    %80 = vmatpush1.msra.mxu0 %v53
    %81 = vmatprep.subr.mxu0 0.0
    %82 = vmatpush1.msra.mxu0 %v54
    %83 = vmatprep.subr.mxu0 0.0
    %84 = vmatpush1.msra.mxu0 %v55
    %85 = vmatprep.subr.mxu0 0.0
    %86 = vmatpush1.msra.mxu0 %v56
    %87 = vmatprep.subr.mxu0 0.0
    %88 = vmatpush1.msra.mxu0 %v57
    %89 = vmatprep.subr.mxu0 0.0
    %90 = vmatpush1.msra.mxu0 %v58
    %91 = vmatprep.subr.mxu0 0.0
    %92 = vmatpush1.msra.mxu0 0.0
    %93 = vmatprep.subr.mxu0 0.0
    %94 = vmatpush1.msra.mxu0 0.0
    %95 = vmatprep.subr.mxu0 0.0
    %96 = vmatpush1.msra.mxu0 0.0
    %97 = vmatprep.subr.mxu0 0.0
    %98 = vmatpush1.msra.mxu0 0.0
    %99 = vmatprep.subr.mxu0 0.0
    %100 = vmatpush1.msra.mxu0 0.0
    %101 = vmatprep.subr.mxu0 0.0
    %102 = vmatpush1.msra.mxu0 0.0
    %103 = vmatprep.subr.mxu0 0.0
    %104 = vmatpush1.msra.mxu0 0.0
    %105 = vmatprep.subr.mxu0 0.0
    %106 = vmatpush1.msra.mxu0 0.0
    %107 = vmatprep.subr.mxu0 0.0
    %108 = vmatpush1.msra.mxu0 0.0
    %109 = vmatprep.subr.mxu0 0.0
    %110 = vmatpush1.msra.mxu0 0.0
    %111 = vmatprep.subr.mxu0 0.0
    %112 = vmatpush1.msra.mxu0 0.0
    %113 = vmatprep.subr.mxu0 0.0
    %114 = vmatpush1.msra.mxu0 0.0
    %115 = vmatprep.subr.mxu0 0.0
    %116 = vmatpush1.msra.mxu0 0.0
    %117 = vmatprep.subr.mxu0 0.0
    %118 = vmatpush1.msra.mxu0 0.0
    %119 = vmatprep.subr.mxu0 0.0
    %120 = vmatpush1.msra.mxu0 0.0
    %121 = vmatprep.subr.mxu0 0.0
    %122 = vmatpush1.msra.mxu0 0.0
    %123 = vmatprep.mubr.f32.mxu0 0.0
    %124 = vmatmul.mubr.f32.gmra.mrb[0].mxu0 %v42
    %v125 = vpop.f32.mrb[0].mxu0
    %v126 = vadd.f32 0.0, %v125
    %v127 = vpop.f32.mrb[0].mxu0
    %128 = vdwg.mxu0
    %v129 = vld [vmem:[#allocation5] sm:$0xff]
    %v130 = vadd.f32 %v129, %v126
    %131 = vst [vmem:[#allocation5] sm:$0xff] %v130
    // Predicated region
    $region18: #{tpu_custom_call.1} parent=1 // pred_check
      _
    $region19: #{tpu_custom_call.1} parent=1 // pred_check_branch
      %133 = sbr.rel (0) target = $region21
    $region20: #{tpu_custom_call.1} parent=1 // pred_region
      %s135 = ssub.s32 128, 128
      %136 = vsyncadd [#allocation4], %s135
      %s138 = sshll.u32 [#allocation5], 4
      %s139 = int_to_ptr.vmem [resolvable:$true] %s138
      %141 = dma.vmem_to_hbm [thread:$0]  %s139, 128, %s2, [#allocation4]
    $region21: #{tpu_custom_call.1} parent=1 // pred_fallthru
      _
    // Predicated region
    $region22: #{tpu_custom_call.1} parent=1 // pred_check
      _
    $region23: #{tpu_custom_call.1} parent=1 // pred_check_branch
      %143 = sbr.rel (0) target = $region25
    $region24: #{tpu_custom_call.1} parent=1 // pred_region
      %144 = dma.done [#allocation4], 128
    $region25: #{tpu_custom_call.1} parent=1 // pred_fallthru
      _
    %145 = vsyncpa [#allocation3], 1
    %146 = vsyncpa [#allocation4], 1

</llo_original>
